<compile_context>
chip_gen: v7x
topology: tpu7x:2x2x1
jax: 0.10.0
libtpu: 0.0.40
codegen_flags: <defaults>
</compile_context>

<pallas_src>
import functools

import jax
import jax.numpy as jnp
from jax.experimental import pallas as pl
from jax.experimental.pallas import tpu as pltpu


_TARGET_TILE_BYTES = 2 << 20  # ~2 MiB per pipelined x block (per buffer)


def _choose_tile_l(C, L, itemsize, max_lanes=1024):
    """L tile: full L when it fits the lane budget, otherwise the largest
    multiple of 128 (capped at max_lanes) keeping one (C, tile_l) slab
    around <= 2 MiB so double-buffering stays far below scoped VMEM."""
    lane_budget = (_TARGET_TILE_BYTES // max(1, C * itemsize)) // 128 * 128
    tl = max(128, min(max_lanes, lane_budget))
    if tl >= L:
        return L  # full-extent block (exempt from the 128-lane rule)
    return tl


def _choose_tile_b(B, C, tile_l, itemsize):
    """Batch rows per block: enough that one grid step moves ~2 MiB (amortize
    per-step overhead when C is small), restricted to divisors of B that are
    1, B, or multiples of 8 (no ragged batch blocks, sublane-friendly)."""
    per_row = max(1, C * tile_l * itemsize)
    want = int(max(1, min(B, _TARGET_TILE_BYTES // per_row)))
    best = 1
    for d in range(1, want + 1):
        if B % d == 0 and (d == 1 or d == B or d % 8 == 0):
            best = d
    return best


def _channel_attention_kernel(x_ref, w1_ref, b1_ref, w2_ref, b2_ref, o_ref,
                              sum_acc, max_acc, *, L, tL, tB):
    # x_ref:  (tB, C, tL) streamed tile of x
    # w1_ref: (C, H), b1_ref: (1, H), w2_ref: (H, C), b2_ref: (1, C)
    # o_ref:  (tB, C) output block, resident across the L sweep
    # sum_acc / max_acc: (tB, C) f32 scratch accumulators
    l = pl.program_id(1)

    @pl.when(l == 0)
    def _init():
        sum_acc[...] = jnp.zeros_like(sum_acc)
        max_acc[...] = jnp.full(max_acc.shape, -jnp.inf, dtype=max_acc.dtype)

    x = x_ref[...].astype(jnp.float32)  # (tB, C, tL)

    if L % tL != 0:
        # Ragged last tile: mask out-of-range lanes (L, tL static -> cheap,
        # and hidden under the HBM stream anyway).
        lane = jax.lax.broadcasted_iota(jnp.int32, x.shape, 2)
        valid = (l * tL + lane) < L
        x_sum = jnp.where(valid, x, 0.0)
        x_max = jnp.where(valid, x, -jnp.inf)
    else:
        x_sum = x_max = x

    # Per-tile reduction over the lane (L) axis into tiny (tB, C) accumulators.
    sum_acc[...] = sum_acc[...] + jnp.sum(x_sum, axis=-1)
    max_acc[...] = jnp.maximum(max_acc[...], jnp.max(x_max, axis=-1))

    @pl.when(l == pl.num_programs(1) - 1)
    def _finalize():
        avg = sum_acc[...] * (1.0 / L)                 # (tB, C)
        mx = max_acc[...]                              # (tB, C)
        # Shared-weight MLP fused over both pooled vectors: 2 matmuls, not 4.
        pooled = jnp.concatenate([avg, mx], axis=0)    # (2*tB, C)
        h = jnp.dot(pooled, w1_ref[...],
                    preferred_element_type=jnp.float32) + b1_ref[...]
        h = jnp.maximum(h, 0.0)                        # ReLU
        y = jnp.dot(h, w2_ref[...],
                    preferred_element_type=jnp.float32) + b2_ref[...]  # (2*tB, C)
        out = jax.nn.sigmoid(y[:tB, :] + y[tB:, :])    # (tB, C)
        o_ref[...] = out.astype(o_ref.dtype)


def channel_attention(x, w1, b1, w2, b2, *, tile_l=None, tile_b=None):
    """x: (B, C, L) (f32 or bf16). w1: (H, C), b1: (H,), w2: (C, H), b2: (C,)
    in PyTorch nn.Linear layout. Returns (B, C, 1) in x.dtype."""
    B, C, L = x.shape
    H = w1.shape[0]
    itemsize = jnp.dtype(x.dtype).itemsize

    if tile_l is None:
        tile_l = _choose_tile_l(C, L, itemsize)
    if tile_b is None:
        tile_b = _choose_tile_b(B, C, tile_l, itemsize)
    num_b = B // tile_b
    num_l = pl.cdiv(L, tile_l)

    # Present weights in "input @ W" orientation, biases as (1, dim) rows.
    w1_t = jnp.asarray(w1, jnp.float32).T            # (C, H)
    b1_r = jnp.asarray(b1, jnp.float32)[None, :]     # (1, H)
    w2_t = jnp.asarray(w2, jnp.float32).T            # (H, C)
    b2_r = jnp.asarray(b2, jnp.float32)[None, :]     # (1, C)

    kernel = functools.partial(_channel_attention_kernel,
                               L=L, tL=tile_l, tB=tile_b)

    out = pl.pallas_call(
        kernel,
        out_shape=jax.ShapeDtypeStruct((B, C), x.dtype),
        grid_spec=pltpu.PrefetchScalarGridSpec(
            num_scalar_prefetch=0,
            grid=(num_b, num_l),  # (parallel batch blocks, L reduction last)
            in_specs=[
                pl.BlockSpec((tile_b, C, tile_l), lambda b, l: (b, 0, l)),
                pl.BlockSpec((C, H), lambda b, l: (0, 0)),
                pl.BlockSpec((1, H), lambda b, l: (0, 0)),
                pl.BlockSpec((H, C), lambda b, l: (0, 0)),
                pl.BlockSpec((1, C), lambda b, l: (0, 0)),
            ],
            # Same output block across the L axis -> resident output; only the
            # finalize write goes back to HBM.
            out_specs=pl.BlockSpec((tile_b, C), lambda b, l: (b, 0)),
            scratch_shapes=[
                pltpu.VMEM((tile_b, C), jnp.float32),  # running sum
                pltpu.VMEM((tile_b, C), jnp.float32),  # running max
            ],
        ),
        compiler_params=pltpu.CompilerParams(
            dimension_semantics=("parallel", "arbitrary")),
    )(x, w1_t, b1_r, w2_t, b2_r)

    # unsqueeze(-1) to match the PyTorch output shape (B, C, 1).
    return out[..., None]


def _reference(x, w1, b1, w2, b2):
    # Plain-JAX reference matching the PyTorch forward.
    xf = x.astype(jnp.float32)
    avg = jnp.mean(xf, axis=-1)
    mx = jnp.max(xf, axis=-1)

    def mlp(v):
        h = jnp.maximum(v @ w1.T + b1, 0.0)
        return h @ w2.T + b2

    return jax.nn.sigmoid(mlp(avg) + mlp(mx)).astype(x.dtype)[..., None]


if __name__ == "__main__":
    def run_case(B, C, L, ratio, key, **kw):
        H = max(1, C // ratio)
        kx, k1, k2, k3, k4 = jax.random.split(key, 5)
        x = jax.random.normal(kx, (B, C, L), dtype=jnp.float32)
        w1 = 0.1 * jax.random.normal(k1, (H, C), dtype=jnp.float32)
        b1 = 0.1 * jax.random.normal(k2, (H,), dtype=jnp.float32)
        w2 = 0.1 * jax.random.normal(k3, (C, H), dtype=jnp.float32)
        b2 = 0.1 * jax.random.normal(k4, (C,), dtype=jnp.float32)

        out = jax.block_until_ready(channel_attention(x, w1, b1, w2, b2, **kw))
        ref = _reference(x, w1, b1, w2, b2)
        assert out.shape == (B, C, 1), out.shape
        assert jnp.allclose(out, ref, atol=2e-5, rtol=1e-5), "mismatch vs reference"

    key = jax.random.PRNGKey(0)
    k1, k2, k3 = jax.random.split(key, 3)
    # Small module-consistent shape (channels divisible by ratio): one L tile.
    run_case(2, 32, 16, 16, k1)
    # Default tiling: two L tiles with a ragged (masked) last tile.
    run_case(2, 32, 1100, 16, k2)
    # Explicit smaller L tile: three tiles, exercises accumulation + masking.
    run_case(2, 32, 1100, 16, k3, tile_l=512)

    print("KERNEL_OK")
</pallas_src>

<mosaic_0001>
module attributes {stable_mosaic.version = 11 : i64} {
  func.func @_channel_attention_kernel(%arg0: i32, %arg1: i32, %arg2: memref<2x32x16xf32, #tpu.memory_space<vmem>>, %arg3: memref<32x2xf32, #tpu.memory_space<vmem>>, %arg4: memref<1x2xf32, #tpu.memory_space<vmem>>, %arg5: memref<2x32xf32, #tpu.memory_space<vmem>>, %arg6: memref<1x32xf32, #tpu.memory_space<vmem>>, %arg7: memref<2x32xf32, #tpu.memory_space<vmem>>, %arg8: memref<2x32xf32, #tpu.memory_space<vmem>>, %arg9: memref<2x32xf32, #tpu.memory_space<vmem>>) attributes {dimension_semantics = [#tpu.dimension_semantics<parallel>, #tpu.dimension_semantics<arbitrary>], iteration_bounds = array<i64: 1, 1>, scalar_prefetch = 0 : i64, scratch_operands = 2 : i64, tpu.core_type = #tpu.core_type<tc>, window_params = [{transform_indices = @transform_0, window_bounds = array<i64: 2, 32, 16>}, {pipeline_mode = #tpu.pipeline_mode<synchronous>, transform_indices = @transform_1, window_bounds = array<i64: 32, 2>}, {pipeline_mode = #tpu.pipeline_mode<synchronous>, transform_indices = @transform_2, window_bounds = array<i64: 1, 2>}, {pipeline_mode = #tpu.pipeline_mode<synchronous>, transform_indices = @transform_3, window_bounds = array<i64: 2, 32>}, {pipeline_mode = #tpu.pipeline_mode<synchronous>, transform_indices = @transform_4, window_bounds = array<i64: 1, 32>}, {transform_indices = @transform_5, window_bounds = array<i64: 2, 32>}]} {
    %c0_i32 = arith.constant 0 : i32
    %0 = arith.cmpi eq, %arg1, %c0_i32 : i32
    %1 = arith.extui %0 : i1 to i32
    %c0_i32_0 = arith.constant 0 : i32
    %2 = arith.cmpi ne, %1, %c0_i32_0 : i32
    scf.if %2 {
      %cst_14 = arith.constant 0.000000e+00 : f32
      %15 = vector.broadcast %cst_14 : f32 to vector<2x32xf32>
      %c0_15 = arith.constant 0 : index
      %c0_16 = arith.constant 0 : index
      %16 = vector.load %arg8[%c0_15, %c0_16] : memref<2x32xf32, #tpu.memory_space<vmem>>, vector<2x32xf32>
      tpu.vector_store %arg8[%c0_15, %c0_16], %15 {strides = array<i32>} : memref<2x32xf32, #tpu.memory_space<vmem>>, vector<2x32xf32>,
      %cst_17 = arith.constant 0xFF800000 : f32
      %17 = vector.broadcast %cst_17 : f32 to vector<2x32xf32>
      %c0_18 = arith.constant 0 : index
      %c0_19 = arith.constant 0 : index
      %18 = vector.load %arg9[%c0_18, %c0_19] : memref<2x32xf32, #tpu.memory_space<vmem>>, vector<2x32xf32>
      tpu.vector_store %arg9[%c0_18, %c0_19], %17 {strides = array<i32>} : memref<2x32xf32, #tpu.memory_space<vmem>>, vector<2x32xf32>,
    } else {
    }
    %c0 = arith.constant 0 : index
    %c0_1 = arith.constant 0 : index
    %c0_2 = arith.constant 0 : index
    %3 = vector.load %arg2[%c0, %c0_1, %c0_2] : memref<2x32x16xf32, #tpu.memory_space<vmem>>, vector<2x32x16xf32>
    %c0_3 = arith.constant 0 : index
    %c0_4 = arith.constant 0 : index
    %4 = vector.load %arg8[%c0_3, %c0_4] : memref<2x32xf32, #tpu.memory_space<vmem>>, vector<2x32xf32>
    %cst = arith.constant dense<0.000000e+00> : vector<2x32xf32>
    %5 = vector.multi_reduction <add>, %3, %cst [2] : vector<2x32x16xf32> to vector<2x32xf32>
    %6 = arith.addf %4, %5 : vector<2x32xf32>
    %c0_5 = arith.constant 0 : index
    %c0_6 = arith.constant 0 : index
    %7 = vector.load %arg8[%c0_5, %c0_6] : memref<2x32xf32, #tpu.memory_space<vmem>>, vector<2x32xf32>
    tpu.vector_store %arg8[%c0_5, %c0_6], %6 {strides = array<i32>} : memref<2x32xf32, #tpu.memory_space<vmem>>, vector<2x32xf32>,
    %c0_7 = arith.constant 0 : index
    %c0_8 = arith.constant 0 : index
    %8 = vector.load %arg9[%c0_7, %c0_8] : memref<2x32xf32, #tpu.memory_space<vmem>>, vector<2x32xf32>
    %cst_9 = arith.constant dense<0xFF800000> : vector<2x32xf32>
    %9 = vector.multi_reduction <maximumf>, %3, %cst_9 [2] : vector<2x32x16xf32> to vector<2x32xf32>
    %10 = arith.maximumf %8, %9 : vector<2x32xf32>
    %c0_10 = arith.constant 0 : index
    %c0_11 = arith.constant 0 : index
    %11 = vector.load %arg9[%c0_10, %c0_11] : memref<2x32xf32, #tpu.memory_space<vmem>>, vector<2x32xf32>
    tpu.vector_store %arg9[%c0_10, %c0_11], %10 {strides = array<i32>} : memref<2x32xf32, #tpu.memory_space<vmem>>, vector<2x32xf32>,
    %c0_i32_12 = arith.constant 0 : i32
    %12 = arith.cmpi eq, %arg1, %c0_i32_12 : i32
    %13 = arith.extui %12 : i1 to i32
    %c0_i32_13 = arith.constant 0 : i32
    %14 = arith.cmpi ne, %13, %c0_i32_13 : i32
    scf.if %14 {
      %c0_14 = arith.constant 0 : index
      %c0_15 = arith.constant 0 : index
      %15 = vector.load %arg8[%c0_14, %c0_15] : memref<2x32xf32, #tpu.memory_space<vmem>>, vector<2x32xf32>
      %cst_16 = arith.constant 6.250000e-02 : f32
      %16 = vector.broadcast %cst_16 : f32 to vector<2x32xf32>
      %17 = arith.mulf %15, %16 : vector<2x32xf32>
      %c0_17 = arith.constant 0 : index
      %c0_18 = arith.constant 0 : index
      %18 = vector.load %arg9[%c0_17, %c0_18] : memref<2x32xf32, #tpu.memory_space<vmem>>, vector<2x32xf32>
      %19 = tpu.concatenate %17, %18 in 0 : vector<2x32xf32>, vector<2x32xf32> -> vector<4x32xf32>
      %c0_19 = arith.constant 0 : index
      %c0_20 = arith.constant 0 : index
      %20 = vector.load %arg3[%c0_19, %c0_20] : memref<32x2xf32, #tpu.memory_space<vmem>>, vector<32x2xf32>
      %cst_21 = arith.constant dense<0.000000e+00> : vector<4x2xf32>
      %21 = tpu.matmul %19, %20, %cst_21 {dimension_numbers = #tpu.dot_dimension_numbers<[1], [0], [0], [1], [0, 0, 1, 1], [], []>} : vector<4x32xf32>, vector<32x2xf32>, vector<4x2xf32> -> vector<4x2xf32>
      %c0_22 = arith.constant 0 : index
      %c0_23 = arith.constant 0 : index
      %22 = vector.load %arg4[%c0_22, %c0_23] : memref<1x2xf32, #tpu.memory_space<vmem>>, vector<1x2xf32>
      %23 = vector.broadcast %22 : vector<1x2xf32> to vector<4x2xf32>
      %24 = arith.addf %21, %23 : vector<4x2xf32>
      %cst_24 = arith.constant 0.000000e+00 : f32
      %25 = vector.broadcast %cst_24 : f32 to vector<4x2xf32>
      %26 = arith.maximumf %24, %25 : vector<4x2xf32>
      %c0_25 = arith.constant 0 : index
      %c0_26 = arith.constant 0 : index
      %27 = vector.load %arg5[%c0_25, %c0_26] : memref<2x32xf32, #tpu.memory_space<vmem>>, vector<2x32xf32>
      %cst_27 = arith.constant dense<0.000000e+00> : vector<4x32xf32>
      %28 = tpu.matmul %26, %27, %cst_27 {dimension_numbers = #tpu.dot_dimension_numbers<[1], [0], [0], [1], [0, 0, 1, 1], [], []>} : vector<4x2xf32>, vector<2x32xf32>, vector<4x32xf32> -> vector<4x32xf32>
      %c0_28 = arith.constant 0 : index
      %c0_29 = arith.constant 0 : index
      %29 = vector.load %arg6[%c0_28, %c0_29] : memref<1x32xf32, #tpu.memory_space<vmem>>, vector<1x32xf32>
      %30 = vector.broadcast %29 : vector<1x32xf32> to vector<4x32xf32>
      %31 = arith.addf %28, %30 : vector<4x32xf32>
      %32 = vector.extract_strided_slice %31 {offsets = [0, 0], sizes = [2, 32], strides = [1, 1]} : vector<4x32xf32> to vector<2x32xf32>
      %33 = vector.extract_strided_slice %31 {offsets = [2, 0], sizes = [2, 32], strides = [1, 1]} : vector<4x32xf32> to vector<2x32xf32>
      %34 = arith.addf %32, %33 : vector<2x32xf32>
      %35 = arith.negf %34 : vector<2x32xf32>
      %36 = math.exp %35 : vector<2x32xf32>
      %cst_30 = arith.constant 1.000000e+00 : f32
      %37 = vector.broadcast %cst_30 : f32 to vector<2x32xf32>
      %38 = arith.addf %37, %36 : vector<2x32xf32>
      %39 = arith.divf %37, %38 : vector<2x32xf32>
      %c0_31 = arith.constant 0 : index
      %c0_32 = arith.constant 0 : index
      %40 = vector.load %arg7[%c0_31, %c0_32] : memref<2x32xf32, #tpu.memory_space<vmem>>, vector<2x32xf32>
      tpu.vector_store %arg7[%c0_31, %c0_32], %39 {strides = array<i32>} : memref<2x32xf32, #tpu.memory_space<vmem>>, vector<2x32xf32>,
    } else {
    }
    return
  }
  func.func @transform_0(%arg0: i32, %arg1: i32) -> (i32, i32, i32) {
    %c0_i32 = arith.constant 0 : i32
    %c0_i32_0 = arith.constant 0 : i32
    return %arg0, %c0_i32, %arg1 : i32, i32, i32
  }
  func.func @transform_1(%arg0: i32, %arg1: i32) -> (i32, i32) {
    %c0_i32 = arith.constant 0 : i32
    %c0_i32_0 = arith.constant 0 : i32
    %c0_i32_1 = arith.constant 0 : i32
    return %c0_i32, %c0_i32_0 : i32, i32
  }
  func.func @transform_2(%arg0: i32, %arg1: i32) -> (i32, i32) {
    %c0_i32 = arith.constant 0 : i32
    %c0_i32_0 = arith.constant 0 : i32
    %c0_i32_1 = arith.constant 0 : i32
    return %c0_i32, %c0_i32_0 : i32, i32
  }
  func.func @transform_3(%arg0: i32, %arg1: i32) -> (i32, i32) {
    %c0_i32 = arith.constant 0 : i32
    %c0_i32_0 = arith.constant 0 : i32
    %c0_i32_1 = arith.constant 0 : i32
    return %c0_i32, %c0_i32_0 : i32, i32
  }
  func.func @transform_4(%arg0: i32, %arg1: i32) -> (i32, i32) {
    %c0_i32 = arith.constant 0 : i32
    %c0_i32_0 = arith.constant 0 : i32
    %c0_i32_1 = arith.constant 0 : i32
    return %c0_i32, %c0_i32_0 : i32, i32
  }
  func.func @transform_5(%arg0: i32, %arg1: i32) -> (i32, i32) {
    %c0_i32 = arith.constant 0 : i32
    %c0_i32_0 = arith.constant 0 : i32
    return %arg0, %c0_i32 : i32, i32
  }
}

</mosaic_0001>

<llo_original>
// kernel: tpu_custom_call.1
$region0: #{tpu_custom_call.1}
  #allocation0 [shape = 'u32[]', space=smem, size = 0x4, offset = 0x4, fixed_abs, tag = 'smem constant byte address 0x4 - core index']
  #allocation1 [shape = 'u32[144,128]{1,0:T(1,128)}', space=vmem, size = 0x12000, scoped, tag = 'internal scratch']
  #allocation2 [shape = 'f32[2,32]{1,0:T(2,128)}', space=vmem, size = 0x400, scoped, tag = 'scratch operand']
  #allocation3 [shape = 'f32[2,32]{1,0:T(2,128)}', space=vmem, size = 0x400, scoped, tag = 'scratch operand']
  %s0 = inlined_call_operand.vmem [shape: f32[2,32,16], index: 0, kind: input, shape index: {}]
  %s1 = inlined_call_operand.vmem [shape: f32[32,2], index: 1, kind: input, shape index: {}]
  %s2 = inlined_call_operand.vmem [shape: f32[1,2], index: 2, kind: input, shape index: {}]
  %s3 = inlined_call_operand.vmem [shape: f32[2,32], index: 3, kind: input, shape index: {}]
  %s4 = inlined_call_operand.vmem [shape: f32[1,32], index: 4, kind: input, shape index: {}]
  %s5 = inlined_call_operand.hbm [shape: f32[2,32], index: 5, kind: output, shape index: {}]
  %s6 = sld [smem:[#allocation0]]
  $region38: #{tpu_custom_call.1} parent=0
    _
  %s8 = ssub.s32 1, %s6
  %s9 = scalar_select 0, %s8, %s6
  $region1: #{tpu_custom_call.1} parent=0
    #allocation4 [shape = 'u8[1024]{0}', space=vmem, size = 0x400, scoped, tag = 'output window, operand 0, single buffered']
    #allocation5 [shape = 's32[1]{0}', space=sflag, size = 0x4, scoped, tag = 'scoped memory for tpu_custom_call.1']
    %10 = vsyncpa [#allocation5], 0
    // Predicated region
    $region2: #{tpu_custom_call.1} parent=1 // pred_check
      _
    $region3: #{tpu_custom_call.1} parent=1 // pred_check_branch
      %12 = sbr.rel (0) target = $region5
    $region4: #{tpu_custom_call.1} parent=1 // pred_region
      _
    $region5: #{tpu_custom_call.1} parent=1 // pred_fallthru
      _
    // Predicated region
    $region6: #{tpu_custom_call.1} parent=1 // pred_check
      _
    $region7: #{tpu_custom_call.1} parent=1 // pred_check_branch
      %14 = sbr.rel (0) target = $region9
    $region8: #{tpu_custom_call.1} parent=1 // pred_region
      _
    $region9: #{tpu_custom_call.1} parent=1 // pred_fallthru
      _
    // Predicated region
    $region10: #{tpu_custom_call.1} parent=1 // pred_check
      _
    $region11: #{tpu_custom_call.1} parent=1 // pred_check_branch
      %16 = sbr.rel (0) target = $region13
    $region12: #{tpu_custom_call.1} parent=1 // pred_region
      _
    $region13: #{tpu_custom_call.1} parent=1 // pred_fallthru
      _
    // Predicated region
    $region14: #{tpu_custom_call.1} parent=1 // pred_check
      _
    $region15: #{tpu_custom_call.1} parent=1 // pred_check_branch
      %18 = sbr.rel (0) target = $region17
    $region16: #{tpu_custom_call.1} parent=1 // pred_region
      _
    $region17: #{tpu_custom_call.1} parent=1 // pred_fallthru
      _
    // Predicated region
    $region18: #{tpu_custom_call.1} parent=1 // pred_check
      _
    $region19: #{tpu_custom_call.1} parent=1 // pred_check_branch
      %20 = sbr.rel (0) target = $region21
    $region20: #{tpu_custom_call.1} parent=1 // pred_region
      _
    $region21: #{tpu_custom_call.1} parent=1 // pred_fallthru
      _
    %p21 = scmp.eq.s32.totalorder 0, 0
    // Predicated region
    $region22: #{tpu_custom_call.1} parent=1 // pred_check
      %p22 = pneg %p21
    $region23: #{tpu_custom_call.1} parent=1 // pred_check_branch
      %24 = sbr.rel (%p22) target = $region25
    $region24: #{tpu_custom_call.1} parent=1 // pred_region
      %vm25 = vcmask 254976
      %26 = vst.msk [vmem:[#allocation2] sm:$0x3] %vm25, 0.0
      %27 = vst.msk [vmem:[#allocation3] sm:$0x3] %vm25, -inf
    $region25: #{tpu_custom_call.1} parent=1 // pred_fallthru
      _
    %v28 = vld [vmem:[%s0] sm:$0xff]
    %v29 = vld [vmem:[%s0 + $0x8] sm:$0xff]
    %v30 = vld [vmem:[%s0 + $0x10] sm:$0xff]
    %v31 = vld [vmem:[%s0 + $0x18] sm:$0xff]
    %v32 = vld [vmem:[%s0 + $0x20] sm:$0xff]
    %v33 = vld [vmem:[%s0 + $0x28] sm:$0xff]
    %v34 = vld [vmem:[%s0 + $0x30] sm:$0xff]
    %v35 = vld [vmem:[%s0 + $0x38] sm:$0xff]
    %v36 = vld [vmem:[#allocation2] sm:$0x3]
    %vm37 = vcmask 130048
    %v38 = vsel %vm37, %v28, 0.0
    %39 = vadd.xlane.f32.xlu0 %v38
    %v40 = vpop.xlane.xlu0 %39
    %v41 = vsel %vm37, %v29, 0.0
    %42 = vadd.xlane.f32.xlu0 %v41
    %v43 = vpop.xlane.xlu0 %42
    %v44 = vsel %vm37, %v30, 0.0
    %45 = vadd.xlane.f32.xlu0 %v44
    %v46 = vpop.xlane.xlu0 %45
    %v47 = vsel %vm37, %v31, 0.0
    %48 = vadd.xlane.f32.xlu0 %v47
    %v49 = vpop.xlane.xlu0 %48
    %v50 = vsel %vm37, %v32, 0.0
    %51 = vadd.xlane.f32.xlu0 %v50
    %v52 = vpop.xlane.xlu0 %51
    %v53 = vsel %vm37, %v33, 0.0
    %54 = vadd.xlane.f32.xlu0 %v53
    %v55 = vpop.xlane.xlu0 %54
    %v56 = vsel %vm37, %v34, 0.0
    %57 = vadd.xlane.f32.xlu0 %v56
    %v58 = vpop.xlane.xlu0 %57
    %v59 = vsel %vm37, %v35, 0.0
    %60 = vadd.xlane.f32.xlu0 %v59
    %v61 = vpop.xlane.xlu0 %60
    %v70 = vlaneseq
    %v71 = vand.u32 %v70, 127
    %v72 = vlaneseq
    %v73 = vshrl.u32 %v72, 7
    %v74 = vsub.s32 %v71, %v73
    %v75 = vrot.slane %v40, %v74
    %v76 = vadd.s32 %v71, 4294967288
    %v77 = vlaneseq
    %v78 = vshrl.u32 %v77, 7
    %v79 = vsub.s32 %v76, %v78
    %v80 = vrot.slane %v43, %v79
    %vm81 = vcmask 130112
    %v82 = vsel %vm81, %v80, %v75
    %v83 = vadd.s32 %v71, 4294967280
    %v84 = vlaneseq
    %v85 = vshrl.u32 %v84, 7
    %v86 = vsub.s32 %v83, %v85
    %v87 = vrot.slane %v46, %v86
    %vm88 = vcmask 195712
    %v89 = vsel %vm88, %v87, %v82
    %v90 = vadd.s32 %v71, 4294967272
    %v91 = vlaneseq
    %v92 = vshrl.u32 %v91, 7
    %v93 = vsub.s32 %v90, %v92
    %v94 = vrot.slane %v49, %v93
    %vm95 = vcmask 261312
    %v96 = vsel %vm95, %v94, %v89
    %v97 = vlaneseq
    %v98 = vshrl.u32 %v97, 7
    %v99 = vsub.s32 %v71, %v98
    %v100 = vrot.slane %v52, %v99
    %v101 = vlaneseq
    %v102 = vshrl.u32 %v101, 7
    %v103 = vsub.s32 %v76, %v102
    %v104 = vrot.slane %v55, %v103
    %v105 = vsel %vm81, %v104, %v100
    %v106 = vlaneseq
    %v107 = vshrl.u32 %v106, 7
    %v108 = vsub.s32 %v83, %v107
    %v109 = vrot.slane %v58, %v108
    %v110 = vsel %vm88, %v109, %v105
    %v111 = vlaneseq
    %v112 = vshrl.u32 %v111, 7
    %v113 = vsub.s32 %v90, %v112
    %v114 = vrot.slane %v61, %v113
    %v115 = vsel %vm95, %v114, %v110
    %vm116 = vcmask 1041409
    %v117 = vsel %vm116, %v115, %v96
    %v119 = vadd.f32 %v36, %v117
    %vm120 = vcmask 254976
    %121 = vst.msk [vmem:[#allocation2] sm:$0x3] %vm120, %v119
    %v122 = vld [vmem:[#allocation3] sm:$0x3]
    %v123 = vsel %vm37, %v28, -inf
    %124 = vmax.xlane.f32.xlu0 %v123
    %v125 = vpop.xlane.xlu0 %124
    %v126 = vsel %vm37, %v29, -inf
    %127 = vmax.xlane.f32.xlu0 %v126
    %v128 = vpop.xlane.xlu0 %127
    %v129 = vsel %vm37, %v30, -inf
    %130 = vmax.xlane.f32.xlu0 %v129
    %v131 = vpop.xlane.xlu0 %130
    %v132 = vsel %vm37, %v31, -inf
    %133 = vmax.xlane.f32.xlu0 %v132
    %v134 = vpop.xlane.xlu0 %133
    %v135 = vsel %vm37, %v32, -inf
    %136 = vmax.xlane.f32.xlu0 %v135
    %v137 = vpop.xlane.xlu0 %136
    %v138 = vsel %vm37, %v33, -inf
    %139 = vmax.xlane.f32.xlu0 %v138
    %v140 = vpop.xlane.xlu0 %139
    %v141 = vsel %vm37, %v34, -inf
    %142 = vmax.xlane.f32.xlu0 %v141
    %v143 = vpop.xlane.xlu0 %142
    %v144 = vsel %vm37, %v35, -inf
    %145 = vmax.xlane.f32.xlu0 %v144
    %v146 = vpop.xlane.xlu0 %145
    %v155 = vlaneseq
    %v156 = vshrl.u32 %v155, 7
    %v157 = vsub.s32 %v71, %v156
    %v158 = vrot.slane %v125, %v157
    %v159 = vlaneseq
    %v160 = vshrl.u32 %v159, 7
    %v161 = vsub.s32 %v76, %v160
    %v162 = vrot.slane %v128, %v161
    %v163 = vsel %vm81, %v162, %v158
    %v164 = vlaneseq
    %v165 = vshrl.u32 %v164, 7
    %v166 = vsub.s32 %v83, %v165
    %v167 = vrot.slane %v131, %v166
    %v168 = vsel %vm88, %v167, %v163
    %v169 = vlaneseq
    %v170 = vshrl.u32 %v169, 7
    %v171 = vsub.s32 %v90, %v170
    %v172 = vrot.slane %v134, %v171
    %v173 = vsel %vm95, %v172, %v168
    %v174 = vlaneseq
    %v175 = vshrl.u32 %v174, 7
    %v176 = vsub.s32 %v71, %v175
    %v177 = vrot.slane %v137, %v176
    %v178 = vlaneseq
    %v179 = vshrl.u32 %v178, 7
    %v180 = vsub.s32 %v76, %v179
    %v181 = vrot.slane %v140, %v180
    %v182 = vsel %vm81, %v181, %v177
    %v183 = vlaneseq
    %v184 = vshrl.u32 %v183, 7
    %v185 = vsub.s32 %v83, %v184
    %v186 = vrot.slane %v143, %v185
    %v187 = vsel %vm88, %v186, %v182
    %v188 = vlaneseq
    %v189 = vshrl.u32 %v188, 7
    %v190 = vsub.s32 %v90, %v189
    %v191 = vrot.slane %v146, %v190
    %v192 = vsel %vm95, %v191, %v187
    %v193 = vsel %vm116, %v192, %v173
    %v195 = vmax.f32 %v122, %v193
    %196 = vst.msk [vmem:[#allocation3] sm:$0x3] %vm120, %v195
    // Predicated region
    $region26: #{tpu_custom_call.1} parent=1 // pred_check
      %p197 = pneg %p21
    $region27: #{tpu_custom_call.1} parent=1 // pred_check_branch
      %199 = sbr.rel (%p197) target = $region29
    $region28: #{tpu_custom_call.1} parent=1 // pred_region
      %v200 = vld [vmem:[#allocation2] sm:$0x3]
      %v201 = vmul.f32 %v200, 0.0625
      %v202 = vld [vmem:[#allocation3] sm:$0x3]
      %v204 = vrot.slane %v202, 6
      %vm206 = vcmask 1041408
      %v207 = vsel %vm206, %v201, %v204
      %v208 = vld [vmem:[%s1] sm:$0xff]
      %v209 = vld [vmem:[%s1 + $0x8] sm:$0xff]
      %v210 = vld [vmem:[%s1 + $0x10] sm:$0xff]
      %v211 = vld [vmem:[%s1 + $0x18] sm:$0xff]
      %v212 = vld [vmem:[%s2] sm:$0x1]
      %v214 = vlaneseq
      %v215 = vshrl.u32 %v214, 7
      %v216 = vsub.s32 0, %v215
      %v217 = vrot.slane %v212, %v216
      %vm219 = vcmask 261120
      %v221 = vsel %vm219, %v207, 0
      %223 = vmatprep.subr.mxu0 0.0
      %224 = vmatpush1.msra.mxu0 %v208
      %225 = vmatprep.subr.mxu0 0.0
      %226 = vmatpush1.msra.mxu0 %v209
      %227 = vmatprep.subr.mxu0 0.0
      %228 = vmatpush1.msra.mxu0 %v210
      %229 = vmatprep.subr.mxu0 0.0
      %230 = vmatpush1.msra.mxu0 %v211
      %231 = vmatprep.subr.mxu0 0.0
      %232 = vmatpush1.msra.mxu0 0.0
      %233 = vmatprep.subr.mxu0 0.0
      %234 = vmatpush1.msra.mxu0 0.0
      %235 = vmatprep.subr.mxu0 0.0
      %236 = vmatpush1.msra.mxu0 0.0
      %237 = vmatprep.subr.mxu0 0.0
      %238 = vmatpush1.msra.mxu0 0.0
      %239 = vmatprep.subr.mxu0 0.0
      %240 = vmatpush1.msra.mxu0 0.0
      %241 = vmatprep.subr.mxu0 0.0
      %242 = vmatpush1.msra.mxu0 0.0
      %243 = vmatprep.subr.mxu0 0.0
      %244 = vmatpush1.msra.mxu0 0.0
      %245 = vmatprep.subr.mxu0 0.0
      %246 = vmatpush1.msra.mxu0 0.0
      %247 = vmatprep.subr.mxu0 0.0
      %248 = vmatpush1.msra.mxu0 0.0
      %249 = vmatprep.subr.mxu0 0.0
      %250 = vmatpush1.msra.mxu0 0.0
      %251 = vmatprep.subr.mxu0 0.0
      %252 = vmatpush1.msra.mxu0 0.0
      %253 = vmatprep.subr.mxu0 0.0
      %254 = vmatpush1.msra.mxu0 0.0
      %255 = vmatprep.subr.mxu0 0.0
      %256 = vmatpush1.msra.mxu0 0.0
      %257 = vmatprep.subr.mxu0 0.0
      %258 = vmatpush1.msra.mxu0 0.0
      %259 = vmatprep.subr.mxu0 0.0
      %260 = vmatpush1.msra.mxu0 0.0
      %261 = vmatprep.subr.mxu0 0.0
      %262 = vmatpush1.msra.mxu0 0.0
      %263 = vmatprep.subr.mxu0 0.0
      %264 = vmatpush1.msra.mxu0 0.0
      %265 = vmatprep.subr.mxu0 0.0
      %266 = vmatpush1.msra.mxu0 0.0
      %267 = vmatprep.subr.mxu0 0.0
      %268 = vmatpush1.msra.mxu0 0.0
      %269 = vmatprep.subr.mxu0 0.0
      %270 = vmatpush1.msra.mxu0 0.0
      %271 = vmatprep.subr.mxu0 0.0
      %272 = vmatpush1.msra.mxu0 0.0
      %273 = vmatprep.subr.mxu0 0.0
      %274 = vmatpush1.msra.mxu0 0.0
      %275 = vmatprep.subr.mxu0 0.0
      %276 = vmatpush1.msra.mxu0 0.0
      %277 = vmatprep.subr.mxu0 0.0
      %278 = vmatpush1.msra.mxu0 0.0
      %279 = vmatprep.subr.mxu0 0.0
      %280 = vmatpush1.msra.mxu0 0.0
      %281 = vmatprep.subr.mxu0 0.0
      %282 = vmatpush1.msra.mxu0 0.0
      %283 = vmatprep.subr.mxu0 0.0
      %284 = vmatpush1.msra.mxu0 0.0
      %285 = vmatprep.subr.mxu0 0.0
      %286 = vmatpush1.msra.mxu0 0.0
      %287 = vmatprep.mubr.f32.mxu0 0.0
      %288 = vmatmul.mubr.f32.gmra.mrb[0].mxu0 %v221
      %v289 = vpop.f32.mrb[0].mxu0
      %v290 = vadd.f32 %v217, %v289
      %v291 = vpop.f32.mrb[0].mxu0
      %292 = vdwg.mxu0
      %v293 = vmax.f32 %v290, 0.0
      %v294 = vld [vmem:[%s3] sm:$0x3]
      %v295 = vld [vmem:[%s4] sm:$0x1]
      %v297 = vlaneseq
      %v298 = vshrl.u32 %v297, 7
      %v299 = vsub.s32 0, %v298
      %v300 = vrot.slane %v295, %v299
      %vm302 = vcmask 15360
      %v304 = vsel %vm302, %v293, 0
      %v307 = vsel %vm206, %v294, 0
      %309 = vmatprep.subr.mxu0 0.0
      %310 = vmatpush1.msra.mxu0 %v307
      %311 = vmatprep.subr.mxu0 0.0
      %312 = vmatpush1.msra.mxu0 0.0
      %313 = vmatprep.subr.mxu0 0.0
      %314 = vmatpush1.msra.mxu0 0.0
      %315 = vmatprep.subr.mxu0 0.0
      %316 = vmatpush1.msra.mxu0 0.0
      %317 = vmatprep.subr.mxu0 0.0
      %318 = vmatpush1.msra.mxu0 0.0
      %319 = vmatprep.subr.mxu0 0.0
      %320 = vmatpush1.msra.mxu0 0.0
      %321 = vmatprep.subr.mxu0 0.0
      %322 = vmatpush1.msra.mxu0 0.0
      %323 = vmatprep.subr.mxu0 0.0
      %324 = vmatpush1.msra.mxu0 0.0
      %325 = vmatprep.subr.mxu0 0.0
      %326 = vmatpush1.msra.mxu0 0.0
      %327 = vmatprep.subr.mxu0 0.0
      %328 = vmatpush1.msra.mxu0 0.0
      %329 = vmatprep.subr.mxu0 0.0
      %330 = vmatpush1.msra.mxu0 0.0
      %331 = vmatprep.subr.mxu0 0.0
      %332 = vmatpush1.msra.mxu0 0.0
      %333 = vmatprep.subr.mxu0 0.0
      %334 = vmatpush1.msra.mxu0 0.0
      %335 = vmatprep.subr.mxu0 0.0
      %336 = vmatpush1.msra.mxu0 0.0
      %337 = vmatprep.subr.mxu0 0.0
      %338 = vmatpush1.msra.mxu0 0.0
      %339 = vmatprep.subr.mxu0 0.0
      %340 = vmatpush1.msra.mxu0 0.0
      %341 = vmatprep.subr.mxu0 0.0
      %342 = vmatpush1.msra.mxu0 0.0
      %343 = vmatprep.subr.mxu0 0.0
      %344 = vmatpush1.msra.mxu0 0.0
      %345 = vmatprep.subr.mxu0 0.0
      %346 = vmatpush1.msra.mxu0 0.0
      %347 = vmatprep.subr.mxu0 0.0
      %348 = vmatpush1.msra.mxu0 0.0
      %349 = vmatprep.subr.mxu0 0.0
      %350 = vmatpush1.msra.mxu0 0.0
      %351 = vmatprep.subr.mxu0 0.0
      %352 = vmatpush1.msra.mxu0 0.0
      %353 = vmatprep.subr.mxu0 0.0
      %354 = vmatpush1.msra.mxu0 0.0
      %355 = vmatprep.subr.mxu0 0.0
      %356 = vmatpush1.msra.mxu0 0.0
      %357 = vmatprep.subr.mxu0 0.0
      %358 = vmatpush1.msra.mxu0 0.0
      %359 = vmatprep.subr.mxu0 0.0
      %360 = vmatpush1.msra.mxu0 0.0
      %361 = vmatprep.subr.mxu0 0.0
      %362 = vmatpush1.msra.mxu0 0.0
      %363 = vmatprep.subr.mxu0 0.0
      %364 = vmatpush1.msra.mxu0 0.0
      %365 = vmatprep.subr.mxu0 0.0
      %366 = vmatpush1.msra.mxu0 0.0
      %367 = vmatprep.subr.mxu0 0.0
      %368 = vmatpush1.msra.mxu0 0.0
      %369 = vmatprep.subr.mxu0 0.0
      %370 = vmatpush1.msra.mxu0 0.0
      %371 = vmatprep.subr.mxu0 0.0
      %372 = vmatpush1.msra.mxu0 0.0
      %373 = vmatprep.mubr.f32.mxu0 0.0
      %374 = vmatmul.mubr.f32.gmra.mrb[0].mxu0 %v304
      %v375 = vpop.f32.mrb[0].mxu0
      %v376 = vadd.f32 %v300, %v375
      %v377 = vpop.f32.mrb[0].mxu0
      %378 = vdwg.mxu0
      %v380 = vrot.slane %v376, 2
      %v382 = vadd.f32 %v376, %v380
      %v383 = vxor.u32 %v382, 2147483648
      %v384 = vmul.f32 %v383, 1.442695
      %v385 = vpow.pop %v384
      %v386 = vadd.f32 %v385, 1.0
      %v387 = vrcp.pop %v386
      %v388 = vmul.f32 1.0, %v387
      %389 = vst.msk [vmem:[#allocation4] sm:$0x3] %vm120, %v388
    $region29: #{tpu_custom_call.1} parent=1 // pred_fallthru
      _
    // Predicated region
    $region30: #{tpu_custom_call.1} parent=1 // pred_check
      _
    $region31: #{tpu_custom_call.1} parent=1 // pred_check_branch
      %391 = sbr.rel (0) target = $region33
    $region32: #{tpu_custom_call.1} parent=1 // pred_region
      %s393 = ssub.s32 32, 32
      %394 = vsyncadd [#allocation5], %s393
      %s396 = sshll.u32 [#allocation4], 4
      %s397 = int_to_ptr.vmem [resolvable:$true] %s396
      %399 = dma.vmem_to_hbm [thread:$0]  %s397, 32, %s5, [#allocation5]
    $region33: #{tpu_custom_call.1} parent=1 // pred_fallthru
      _
    // Predicated region
    $region34: #{tpu_custom_call.1} parent=1 // pred_check
      _
    $region35: #{tpu_custom_call.1} parent=1 // pred_check_branch
      %401 = sbr.rel (0) target = $region37
    $region36: #{tpu_custom_call.1} parent=1 // pred_region
      %402 = dma.done [#allocation5], 32
    $region37: #{tpu_custom_call.1} parent=1 // pred_fallthru
      _
    %403 = vsyncpa [#allocation5], 1

</llo_original>
